<compile_context>
chip_gen: v7x
topology: tpu7x:2x2x1
jax: 0.10.0
libtpu: 0.0.40
codegen_flags: <defaults>
</compile_context>

<pallas_src>
import functools

import jax
import jax.numpy as jnp
from jax import lax
from jax.experimental import pallas as pl
from jax.experimental.pallas import tpu as pltpu


def _vmem_budget_bytes():
    """Physical VMEM of this TPU generation; falls back to 64 MiB (v7x, the
    most constrained generation) so the fallback is safe everywhere."""
    try:
        info = pltpu.get_tpu_info()
        cap = getattr(info, "vmem_capacity_bytes", None)
        if cap:
            return int(cap)
    except Exception:
        pass
    return 64 * 1024 * 1024


# ----------------------------------------------------------------------------
# Fused single-pass kernel: GAP + MLP + score + sigmoid + scale (grid = (B,))
# ----------------------------------------------------------------------------
def _pam_fused_kernel(x_ref, w1_ref, b1_ref, w2_ref, b2_ref, o_ref, *, hw):
    """x block (1, C, HW) resident in VMEM; x is read from HBM exactly once."""
    x = x_ref[0].astype(jnp.float32)                                   # (C, HW)
    # Global average pool (per-channel mean over the lane-dense pixel axis).
    z = jnp.sum(x, axis=1, keepdims=True) * (1.0 / hw)                 # (C, 1)
    # Tiny channel MLP (the two 1x1 convs).
    h = jnp.dot(w1_ref[...], z, preferred_element_type=jnp.float32)    # (Cr, 1)
    h = jnp.maximum(h + b1_ref[...], 0.0)
    z2 = jnp.dot(w2_ref[...], h, preferred_element_type=jnp.float32)   # (C, 1)
    z2 = z2 + b2_ref[...]
    # Per-pixel score <x[:, p], z2>: broadcast-mul + sublane reduce keeps the
    # result lane-dense (1, HW) with no in-kernel transpose; pure filler under
    # the HBM stream.
    s = jnp.sum(x * z2, axis=0, keepdims=True)                         # (1, HW)
    a = jax.nn.sigmoid(s)                                              # (1, HW)
    o_ref[0] = (x * a).astype(o_ref.dtype)                             # broadcast over C


# ----------------------------------------------------------------------------
# Two-phase fallback, phase 1: GAP (streamed over HW tiles) + channel MLP
# ----------------------------------------------------------------------------
def _pam_gap_mlp_kernel(x_ref, w1_ref, b1_ref, w2_ref, b2_ref, z2_ref, acc_ref,
                        *, hw, tile, mask_tail):
    """x block (1, C, T); accumulates per-channel sums; at the last HW tile
    applies the 1x1-conv MLP once per batch and writes z2 (C, 1)."""
    t = pl.program_id(1)

    @pl.when(t == 0)
    def _():
        acc_ref[...] = jnp.zeros_like(acc_ref)

    x = x_ref[0].astype(jnp.float32)                                   # (C, T)
    if mask_tail:
        # Zero out the out-of-range pad columns of the partial last tile.
        col = t * tile + lax.broadcasted_iota(jnp.int32, x.shape, 1)
        x = jnp.where(col < hw, x, 0.0)
    acc_ref[...] += jnp.sum(x, axis=1, keepdims=True)

    @pl.when(t == pl.num_programs(1) - 1)
    def _():
        z = acc_ref[...] * (1.0 / hw)                                     # (C, 1)
        h = jnp.dot(w1_ref[...], z, preferred_element_type=jnp.float32)   # (Cr, 1)
        h = jnp.maximum(h + b1_ref[...], 0.0)
        z2 = jnp.dot(w2_ref[...], h, preferred_element_type=jnp.float32)  # (C, 1)
        z2_ref[0] = (z2 + b2_ref[...]).astype(z2_ref.dtype)


# ----------------------------------------------------------------------------
# Two-phase fallback, phase 2: per-pixel score + sigmoid + scale (streamed)
# ----------------------------------------------------------------------------
def _pam_apply_kernel(z2_ref, x_ref, o_ref):
    # Pad columns of a partial tail tile produce garbage scores, but Pallas
    # discards out-of-bounds output columns, so no masking is needed here.
    x = x_ref[0]                                                # (C, T) lane-dense
    z2 = z2_ref[0]                                              # (1, C)
    s = jnp.dot(z2, x, preferred_element_type=jnp.float32)      # (1, T) lane-dense
    a = jax.nn.sigmoid(s)                                       # (1, T)
    o_ref[0] = (x * a).astype(o_ref.dtype)                      # broadcast over C


def _pick_hw_tile(hw, c, itemsize, target_block_bytes):
    """Largest multiple-of-128 HW tile whose (C, T) block is near the target
    size.  Tail tiles are handled with cdiv + masking, so no divisibility
    requirement (fixes 256 KiB tiles for small C and the whole-HW fallback)."""
    t = (target_block_bytes // max(1, c * itemsize)) // 128 * 128
    t = max(t, 128)
    if t >= hw:
        return hw, 1                       # single full-extent block
    return t, -(-hw // t)                  # cdiv


def pam_forward(x_nchw, w1, b1, w2, b2, *, force_two_phase=False, hw_tile=None):
    """x_nchw: (B, C, H, W). Weights in PyTorch conv-matrix orientation:
    w1 (C//r, C), b1 (C//r, 1), w2 (C, C//r), b2 (C, 1). Returns (B, C, H, W)."""
    B, C, H, W = x_nchw.shape
    HW = H * W
    Cr = w1.shape[0]
    itemsize = jnp.dtype(x_nchw.dtype).itemsize

    x = x_nchw.reshape(B, C, HW)          # metadata-only reshape, stays NCHW

    budget = _vmem_budget_bytes()
    vmem_limit = int(budget * 3 // 4)     # 48 MiB on v7x, 96 MiB on v5e/v6e
    slab_bytes = C * HW * itemsize

    # ---------------- Fused single-pass path (preferred) ----------------------
    # Double-buffered in+out is 4x slab; gating at budget/8 (8 MiB on v7x,
    # 16 MiB on v5e/v6e) leaves >= half the budget for compiler temporaries.
    if (not force_two_phase) and slab_bytes <= budget // 8:
        out = pl.pallas_call(
            functools.partial(_pam_fused_kernel, hw=float(HW)),
            out_shape=jax.ShapeDtypeStruct((B, C, HW), x.dtype),
            grid=(B,),
            in_specs=[
                pl.BlockSpec((1, C, HW), lambda b: (b, 0, 0)),   # x slab
                pl.BlockSpec((Cr, C), lambda b: (0, 0)),         # w1 (resident)
                pl.BlockSpec((Cr, 1), lambda b: (0, 0)),         # b1
                pl.BlockSpec((C, Cr), lambda b: (0, 0)),         # w2
                pl.BlockSpec((C, 1), lambda b: (0, 0)),          # b2
            ],
            out_specs=pl.BlockSpec((1, C, HW), lambda b: (b, 0, 0)),
            compiler_params=pltpu.CompilerParams(
                dimension_semantics=("parallel",),
                vmem_limit_bytes=vmem_limit),
        )(x, w1, b1, w2, b2)
        return out.reshape(B, C, H, W)

    # ---------------- Two-phase streamed fallback (large slabs) ---------------
    target_block_bytes = max(budget // 16, 1 << 20)   # ~4 MiB v7x, ~8 MiB v5e/v6e
    if hw_tile is not None:
        T = int(hw_tile)
        assert T == HW or T % 128 == 0, "hw_tile must be HW or a multiple of 128"
        nt = -(-HW // T)
    else:
        T, nt = _pick_hw_tile(HW, C, itemsize, target_block_bytes)
    mask_tail = (HW % T) != 0

    # Phase 1: z2[b] = conv2(relu(conv1(mean_hw(x[b]))))
    # NOTE: only the batch axis is "parallel" here; a core-parallel HW split
    # would help v7x with B==1 but is below the structural levers above.
    z2 = pl.pallas_call(
        functools.partial(_pam_gap_mlp_kernel, hw=HW, tile=T, mask_tail=mask_tail),
        out_shape=jax.ShapeDtypeStruct((B, C, 1), jnp.float32),
        grid=(B, nt),
        in_specs=[
            pl.BlockSpec((1, C, T), lambda b, t: (b, 0, t)),   # x tile
            pl.BlockSpec((Cr, C), lambda b, t: (0, 0)),        # w1 (resident)
            pl.BlockSpec((Cr, 1), lambda b, t: (0, 0)),        # b1
            pl.BlockSpec((C, Cr), lambda b, t: (0, 0)),        # w2
            pl.BlockSpec((C, 1), lambda b, t: (0, 0)),         # b2
        ],
        out_specs=pl.BlockSpec((1, C, 1), lambda b, t: (b, 0, 0)),
        scratch_shapes=[pltpu.VMEM((C, 1), jnp.float32)],
        compiler_params=pltpu.CompilerParams(
            dimension_semantics=("parallel", "arbitrary"),
            vmem_limit_bytes=vmem_limit),
    )(x, w1, b1, w2, b2)

    # (B, C, 1) -> (B, 1, C): same element order, metadata-only reshape.
    z2_row = z2.reshape(B, 1, C)

    # Phase 2: out = x * sigmoid(<x[:, p], z2>)
    out = pl.pallas_call(
        _pam_apply_kernel,
        out_shape=jax.ShapeDtypeStruct((B, C, HW), x.dtype),
        grid=(B, nt),
        in_specs=[
            pl.BlockSpec((1, 1, C), lambda b, t: (b, 0, 0)),   # z2 (resident per b)
            pl.BlockSpec((1, C, T), lambda b, t: (b, 0, t)),   # x tile
        ],
        out_specs=pl.BlockSpec((1, C, T), lambda b, t: (b, 0, t)),
        compiler_params=pltpu.CompilerParams(
            dimension_semantics=("parallel", "parallel"),
            vmem_limit_bytes=vmem_limit),
    )(z2_row, x)

    return out.reshape(B, C, H, W)


def pam_reference(x, w1, b1, w2, b2):
    """Pure-JAX reference of the same semantics."""
    z = jnp.mean(x, axis=(2, 3))                          # (B, C)
    h = jnp.maximum(z @ w1.T + b1[:, 0], 0.0)             # (B, C/r)
    z2 = h @ w2.T + b2[:, 0]                              # (B, C)
    s = jnp.einsum("bchw,bc->bhw", x, z2)                 # (B, H, W)
    a = jax.nn.sigmoid(s)[:, None, :, :]                  # (B, 1, H, W)
    return x * a


if __name__ == "__main__":
    key = jax.random.PRNGKey(0)
    (kx, k1, k2, k3, k4,
     kx2, k5, k6, k7, k8) = jax.random.split(key, 10)

    # ---- Main case: fused single-pass path (B=2, C=16, 16x16, reduction 8) ----
    B, C, H, W = 2, 16, 16, 16
    Cr = C // 8
    x = jax.random.normal(kx, (B, C, H, W), dtype=jnp.float32)
    # Synthetic parameters in PyTorch conv-matrix orientation
    # (conv1.weight (Cr,C,1,1) -> (Cr,C); conv2.weight (C,Cr,1,1) -> (C,Cr)).
    w1 = jax.random.normal(k1, (Cr, C), dtype=jnp.float32) * 0.1
    b1 = jax.random.normal(k2, (Cr, 1), dtype=jnp.float32) * 0.1
    w2 = jax.random.normal(k3, (C, Cr), dtype=jnp.float32) * 0.1
    b2 = jax.random.normal(k4, (C, 1), dtype=jnp.float32) * 0.1

    out = jax.block_until_ready(pam_forward(x, w1, b1, w2, b2))
    ref = jax.block_until_ready(pam_reference(x, w1, b1, w2, b2))
    assert out.shape == (B, C, H, W)
    assert jnp.allclose(out, ref, atol=1e-5, rtol=1e-4), "fused path mismatch"

    # ---- Fallback case: two-phase streamed path with a masked tail tile ------
    B2, C2, H2, W2 = 1, 8, 20, 20          # HW = 400 -> 128-wide tiles + tail
    Cr2 = C2 // 4
    x2 = jax.random.normal(kx2, (B2, C2, H2, W2), dtype=jnp.float32)
    w1b = jax.random.normal(k5, (Cr2, C2), dtype=jnp.float32) * 0.1
    b1b = jax.random.normal(k6, (Cr2, 1), dtype=jnp.float32) * 0.1
    w2b = jax.random.normal(k7, (C2, Cr2), dtype=jnp.float32) * 0.1
    b2b = jax.random.normal(k8, (C2, 1), dtype=jnp.float32) * 0.1

    out2 = jax.block_until_ready(
        pam_forward(x2, w1b, b1b, w2b, b2b, force_two_phase=True, hw_tile=128))
    ref2 = jax.block_until_ready(pam_reference(x2, w1b, b1b, w2b, b2b))
    assert out2.shape == (B2, C2, H2, W2)
    assert jnp.allclose(out2, ref2, atol=1e-5, rtol=1e-4), "two-phase path mismatch"

    print("KERNEL_OK")
</pallas_src>

<mosaic_0001>
module attributes {stable_mosaic.version = 11 : i64} {
  func.func @_pam_fused_kernel(%arg0: i32, %arg1: memref<1x16x256xf32, #tpu.memory_space<vmem>>, %arg2: memref<2x16xf32, #tpu.memory_space<vmem>>, %arg3: memref<2x1xf32, #tpu.memory_space<vmem>>, %arg4: memref<16x2xf32, #tpu.memory_space<vmem>>, %arg5: memref<16x1xf32, #tpu.memory_space<vmem>>, %arg6: memref<1x16x256xf32, #tpu.memory_space<vmem>>) attributes {dimension_semantics = [#tpu.dimension_semantics<parallel>], iteration_bounds = array<i64: 2>, scalar_prefetch = 0 : i64, scratch_operands = 0 : i64, tpu.core_type = #tpu.core_type<tc>, window_params = [{transform_indices = @transform_0, window_bounds = array<i64: 1, 16, 256>}, {pipeline_mode = #tpu.pipeline_mode<synchronous>, transform_indices = @transform_1, window_bounds = array<i64: 2, 16>}, {pipeline_mode = #tpu.pipeline_mode<synchronous>, transform_indices = @transform_2, window_bounds = array<i64: 2, 1>}, {pipeline_mode = #tpu.pipeline_mode<synchronous>, transform_indices = @transform_3, window_bounds = array<i64: 16, 2>}, {pipeline_mode = #tpu.pipeline_mode<synchronous>, transform_indices = @transform_4, window_bounds = array<i64: 16, 1>}, {transform_indices = @transform_5, window_bounds = array<i64: 1, 16, 256>}]} {
    %c0 = arith.constant 0 : index
    %c0_0 = arith.constant 0 : index
    %c0_1 = arith.constant 0 : index
    %0 = vector.load %arg1[%c0, %c0_0, %c0_1] : memref<1x16x256xf32, #tpu.memory_space<vmem>>, vector<1x16x256xf32>
    %1 = vector.shape_cast %0 : vector<1x16x256xf32> to vector<16x256xf32>
    %cst = arith.constant dense<0.000000e+00> : vector<16xf32>
    %2 = vector.multi_reduction <add>, %1, %cst [1] : vector<16x256xf32> to vector<16xf32>
    %3 = vector.shape_cast %2 : vector<16xf32> to vector<16x1xf32>
    %cst_2 = arith.constant 3.906250e-03 : f32
    %4 = vector.broadcast %cst_2 : f32 to vector<16x1xf32>
    %5 = arith.mulf %3, %4 : vector<16x1xf32>
    %c0_3 = arith.constant 0 : index
    %c0_4 = arith.constant 0 : index
    %6 = vector.load %arg2[%c0_3, %c0_4] : memref<2x16xf32, #tpu.memory_space<vmem>>, vector<2x16xf32>
    %cst_5 = arith.constant dense<0.000000e+00> : vector<2x1xf32>
    %7 = tpu.matmul %6, %5, %cst_5 {dimension_numbers = #tpu.dot_dimension_numbers<[1], [0], [0], [1], [0, 0, 1, 1], [], []>} : vector<2x16xf32>, vector<16x1xf32>, vector<2x1xf32> -> vector<2x1xf32>
    %c0_6 = arith.constant 0 : index
    %c0_7 = arith.constant 0 : index
    %8 = vector.load %arg3[%c0_6, %c0_7] : memref<2x1xf32, #tpu.memory_space<vmem>>, vector<2x1xf32>
    %9 = arith.addf %7, %8 : vector<2x1xf32>
    %cst_8 = arith.constant 0.000000e+00 : f32
    %10 = vector.broadcast %cst_8 : f32 to vector<2x1xf32>
    %11 = arith.maximumf %9, %10 : vector<2x1xf32>
    %c0_9 = arith.constant 0 : index
    %c0_10 = arith.constant 0 : index
    %12 = vector.load %arg4[%c0_9, %c0_10] : memref<16x2xf32, #tpu.memory_space<vmem>>, vector<16x2xf32>
    %cst_11 = arith.constant dense<0.000000e+00> : vector<16x1xf32>
    %13 = tpu.matmul %12, %11, %cst_11 {dimension_numbers = #tpu.dot_dimension_numbers<[1], [0], [0], [1], [0, 0, 1, 1], [], []>} : vector<16x2xf32>, vector<2x1xf32>, vector<16x1xf32> -> vector<16x1xf32>
    %c0_12 = arith.constant 0 : index
    %c0_13 = arith.constant 0 : index
    %14 = vector.load %arg5[%c0_12, %c0_13] : memref<16x1xf32, #tpu.memory_space<vmem>>, vector<16x1xf32>
    %15 = arith.addf %13, %14 : vector<16x1xf32>
    %16 = vector.broadcast %15 : vector<16x1xf32> to vector<16x256xf32>
    %17 = arith.mulf %1, %16 : vector<16x256xf32>
    %cst_14 = arith.constant dense<0.000000e+00> : vector<256xf32>
    %18 = vector.multi_reduction <add>, %17, %cst_14 [0] : vector<16x256xf32> to vector<256xf32>
    %19 = vector.shape_cast %18 : vector<256xf32> to vector<1x256xf32>
    %20 = arith.negf %19 : vector<1x256xf32>
    %21 = math.exp %20 : vector<1x256xf32>
    %cst_15 = arith.constant 1.000000e+00 : f32
    %22 = vector.broadcast %cst_15 : f32 to vector<1x256xf32>
    %23 = arith.addf %22, %21 : vector<1x256xf32>
    %24 = arith.divf %22, %23 : vector<1x256xf32>
    %25 = vector.broadcast %24 : vector<1x256xf32> to vector<16x256xf32>
    %26 = arith.mulf %1, %25 : vector<16x256xf32>
    %c0_16 = arith.constant 0 : index
    %c0_17 = arith.constant 0 : index
    %c0_18 = arith.constant 0 : index
    %27 = vector.load %arg6[%c0_16, %c0_17, %c0_18] : memref<1x16x256xf32, #tpu.memory_space<vmem>>, vector<1x16x256xf32>
    %28 = vector.shape_cast %27 : vector<1x16x256xf32> to vector<16x256xf32>
    %29 = vector.shape_cast %26 : vector<16x256xf32> to vector<1x16x256xf32>
    tpu.vector_store %arg6[%c0_16, %c0_17, %c0_18], %29 {strides = array<i32>} : memref<1x16x256xf32, #tpu.memory_space<vmem>>, vector<1x16x256xf32>,
    return
  }
  func.func @transform_0(%arg0: i32) -> (i32, i32, i32) {
    %c0_i32 = arith.constant 0 : i32
    %c0_i32_0 = arith.constant 0 : i32
    %c0_i32_1 = arith.constant 0 : i32
    return %arg0, %c0_i32, %c0_i32_0 : i32, i32, i32
  }
  func.func @transform_1(%arg0: i32) -> (i32, i32) {
    %c0_i32 = arith.constant 0 : i32
    %c0_i32_0 = arith.constant 0 : i32
    %c0_i32_1 = arith.constant 0 : i32
    return %c0_i32, %c0_i32_0 : i32, i32
  }
  func.func @transform_2(%arg0: i32) -> (i32, i32) {
    %c0_i32 = arith.constant 0 : i32
    %c0_i32_0 = arith.constant 0 : i32
    %c0_i32_1 = arith.constant 0 : i32
    return %c0_i32, %c0_i32_0 : i32, i32
  }
  func.func @transform_3(%arg0: i32) -> (i32, i32) {
    %c0_i32 = arith.constant 0 : i32
    %c0_i32_0 = arith.constant 0 : i32
    %c0_i32_1 = arith.constant 0 : i32
    return %c0_i32, %c0_i32_0 : i32, i32
  }
  func.func @transform_4(%arg0: i32) -> (i32, i32) {
    %c0_i32 = arith.constant 0 : i32
    %c0_i32_0 = arith.constant 0 : i32
    %c0_i32_1 = arith.constant 0 : i32
    return %c0_i32, %c0_i32_0 : i32, i32
  }
  func.func @transform_5(%arg0: i32) -> (i32, i32, i32) {
    %c0_i32 = arith.constant 0 : i32
    %c0_i32_0 = arith.constant 0 : i32
    %c0_i32_1 = arith.constant 0 : i32
    return %arg0, %c0_i32, %c0_i32_0 : i32, i32, i32
  }
}

</mosaic_0001>

<llo_original>
// kernel: tpu_custom_call.1
$region0: #{tpu_custom_call.1}
  #allocation0 [shape = 'u32[]', space=smem, size = 0x4, offset = 0x4, fixed_abs, tag = 'smem constant byte address 0x4 - core index']
  #allocation1 [shape = 'u32[144,128]{1,0:T(1,128)}', space=vmem, size = 0x12000, scoped, tag = 'internal scratch']
  %s0 = inlined_call_operand.hbm [shape: f32[2,16,256], index: 0, kind: input, shape index: {}]
  %s1 = inlined_call_operand.vmem [shape: f32[2,16], index: 1, kind: input, shape index: {}]
  %s2 = inlined_call_operand.vmem [shape: f32[2,1], index: 2, kind: input, shape index: {}]
  %s3 = inlined_call_operand.vmem [shape: f32[16,2], index: 3, kind: input, shape index: {}]
  %s4 = inlined_call_operand.vmem [shape: f32[16,1], index: 4, kind: input, shape index: {}]
  %s5 = inlined_call_operand.hbm [shape: f32[2,16,256], index: 5, kind: output, shape index: {}]
  %s6 = sld [smem:[#allocation0]]
  $region57: #{tpu_custom_call.1} parent=0
    _
  %s8 = ssub.s32 1, %s6
  %s9 = scalar_select 0, %s8, %s6
  $region1: #{tpu_custom_call.1} parent=0
    #allocation2 [shape = 'u8[32768]{0}', space=vmem, size = 0x8000, scoped, tag = 'input window, operand 0']
    #allocation3 [shape = 's32[2]{0}', space=sflag, size = 0x8, scoped, tag = 'scoped memory for tpu_custom_call.1']
    #allocation4 [shape = 's32[2]{0}', space=sflag, size = 0x8, scoped, tag = 'scoped memory for tpu_custom_call.1']
    #allocation5 [shape = 'u8[32768]{0}', space=vmem, size = 0x8000, scoped, tag = 'output window, operand 0']
    %10 = vsyncpa [#allocation3], 0
    %s11 = scalar_lea.sflag [#allocation3], 1
    %12 = vsyncpa %s11, 0
    %13 = vsyncpa [#allocation4], 0
    %s14 = scalar_lea.sflag [#allocation4], 1
    %15 = vsyncpa %s14, 0
    loop: start=0, step=1, limit=4
    $region2: #{tpu_custom_call.1} parent=1 // loop_pre_header
      _
    $region3: #{tpu_custom_call.1} parent=1 // loop_header
      %s17 = sphi 0, %s21
      %p18 = scmp.ge.s32.totalorder %s17, 4
      %s27 = sphi 0, %s29
      %s30 = sphi 0, %s27
      %s31 = sphi 0, %s30
      %s47 = sphi 0, %s31
      %s51 = sphi 0, %s51
      %s53 = sphi 0, %s51
      %s54 = sphi 0, %s53
      %s68 = sphi 0, %s54
      %s72 = sphi 0, %s72
      %s74 = sphi 0, %s72
      %s75 = sphi 0, %s74
      %s89 = sphi 0, %s75
      %s93 = sphi 0, %s93
      %s95 = sphi 0, %s93
      %s96 = sphi 0, %s95
      %s110 = sphi 0, %s96
      %s114 = sphi 0, %s114
      %s116 = sphi 0, %s114
      %s117 = sphi 0, %s116
      %s131 = sphi 0, %s117
      %s137 = sphi 0, %s139
      %s140 = sphi 0, %s137
      %s141 = sphi 0, %s140
      %s157 = sphi 0, %s141
    $region4: #{tpu_custom_call.1} parent=1 // loop_header_branch
      %20 = sbr.rel (%p18) target = $region8
    $region5: #{tpu_custom_call.1} parent=1 // loop_body
      %s22 = ssub.s32 %s17, 1
      %s23 = ssub.s32 %s17, 2
      %s24 = sadd.s32 %s17, 1
      %s25 = ssub.s32 %s17, %s24
      %p26 = scmp.eq.s32.totalorder %s25, 0
      %s28 = sadd.s32 %s27, 1
      %s29 = scalar_select %p26, %s27, %s28
      %p32 = pneg %p26
      %p33 = scmp.eq.s32.totalorder %s17, 1
      %p34 = por %p32, %p33
      %p35 = scmp.ne.s32.totalorder %s27, %s30
      %p36 = scmp.eq.s32.totalorder %s17, 0
      %p37 = por %p35, %p36
      %p38 = scmp.ne.s32.totalorder %s27, %s30
      %p39 = scmp.eq.s32.totalorder %s22, 1
      %p40 = por %p38, %p39
      %p41 = scmp.ne.s32.totalorder %s30, %s31
      %p42 = scmp.eq.s32.totalorder %s22, 0
      %p43 = por %p41, %p42
      %p44 = scmp.ne.s32.totalorder %s30, %s31
      %p45 = scmp.eq.s32.totalorder %s23, 1
      %p46 = por %p44, %p45
      %p48 = scmp.ne.s32.totalorder %s31, %s47
      %p49 = scmp.eq.s32.totalorder %s23, 0
      %p50 = por %p48, %p49
      %s52 = sadd.s32 %s51, 1
      %p55 = scmp.eq.s32.totalorder %s17, 1
      %p56 = scmp.ne.s32.totalorder %s51, %s53
      %p57 = scmp.eq.s32.totalorder %s17, 0
      %p58 = por %p56, %p57
      %p59 = scmp.ne.s32.totalorder %s51, %s53
      %p60 = scmp.eq.s32.totalorder %s22, 1
      %p61 = por %p59, %p60
      %p62 = scmp.ne.s32.totalorder %s53, %s54
      %p63 = scmp.eq.s32.totalorder %s22, 0
      %p64 = por %p62, %p63
      %p65 = scmp.ne.s32.totalorder %s53, %s54
      %p66 = scmp.eq.s32.totalorder %s23, 1
      %p67 = por %p65, %p66
      %p69 = scmp.ne.s32.totalorder %s54, %s68
      %p70 = scmp.eq.s32.totalorder %s23, 0
      %p71 = por %p69, %p70
      %s73 = sadd.s32 %s72, 1
      %p76 = scmp.eq.s32.totalorder %s17, 1
      %p77 = scmp.ne.s32.totalorder %s72, %s74
      %p78 = scmp.eq.s32.totalorder %s17, 0
      %p79 = por %p77, %p78
      %p80 = scmp.ne.s32.totalorder %s72, %s74
      %p81 = scmp.eq.s32.totalorder %s22, 1
      %p82 = por %p80, %p81
      %p83 = scmp.ne.s32.totalorder %s74, %s75
      %p84 = scmp.eq.s32.totalorder %s22, 0
      %p85 = por %p83, %p84
      %p86 = scmp.ne.s32.totalorder %s74, %s75
      %p87 = scmp.eq.s32.totalorder %s23, 1
      %p88 = por %p86, %p87
      %p90 = scmp.ne.s32.totalorder %s75, %s89
      %p91 = scmp.eq.s32.totalorder %s23, 0
      %p92 = por %p90, %p91
      %s94 = sadd.s32 %s93, 1
      %p97 = scmp.eq.s32.totalorder %s17, 1
      %p98 = scmp.ne.s32.totalorder %s93, %s95
      %p99 = scmp.eq.s32.totalorder %s17, 0
      %p100 = por %p98, %p99
      %p101 = scmp.ne.s32.totalorder %s93, %s95
      %p102 = scmp.eq.s32.totalorder %s22, 1
      %p103 = por %p101, %p102
      %p104 = scmp.ne.s32.totalorder %s95, %s96
      %p105 = scmp.eq.s32.totalorder %s22, 0
      %p106 = por %p104, %p105
      %p107 = scmp.ne.s32.totalorder %s95, %s96
      %p108 = scmp.eq.s32.totalorder %s23, 1
      %p109 = por %p107, %p108
      %p111 = scmp.ne.s32.totalorder %s96, %s110
      %p112 = scmp.eq.s32.totalorder %s23, 0
      %p113 = por %p111, %p112
      %s115 = sadd.s32 %s114, 1
      %p118 = scmp.eq.s32.totalorder %s17, 1
      %p119 = scmp.ne.s32.totalorder %s114, %s116
      %p120 = scmp.eq.s32.totalorder %s17, 0
      %p121 = por %p119, %p120
      %p122 = scmp.ne.s32.totalorder %s114, %s116
      %p123 = scmp.eq.s32.totalorder %s22, 1
      %p124 = por %p122, %p123
      %p125 = scmp.ne.s32.totalorder %s116, %s117
      %p126 = scmp.eq.s32.totalorder %s22, 0
      %p127 = por %p125, %p126
      %p128 = scmp.ne.s32.totalorder %s116, %s117
      %p129 = scmp.eq.s32.totalorder %s23, 1
      %p130 = por %p128, %p129
      %p132 = scmp.ne.s32.totalorder %s117, %s131
      %p133 = scmp.eq.s32.totalorder %s23, 0
      %p134 = por %p132, %p133
      %s135 = ssub.s32 %s17, %s24
      %p136 = scmp.eq.s32.totalorder %s135, 0
      %s138 = sadd.s32 %s137, 1
      %s139 = scalar_select %p136, %s137, %s138
      %p142 = pneg %p136
      %p143 = scmp.eq.s32.totalorder %s17, 1
      %p144 = por %p142, %p143
      %p145 = scmp.ne.s32.totalorder %s137, %s140
      %p146 = scmp.eq.s32.totalorder %s17, 0
      %p147 = por %p145, %p146
      %p148 = scmp.ne.s32.totalorder %s137, %s140
      %p149 = scmp.eq.s32.totalorder %s22, 1
      %p150 = por %p148, %p149
      %p151 = scmp.ne.s32.totalorder %s140, %s141
      %p152 = scmp.eq.s32.totalorder %s22, 0
      %p153 = por %p151, %p152
      %p154 = scmp.ne.s32.totalorder %s140, %s141
      %p155 = scmp.eq.s32.totalorder %s23, 1
      %p156 = por %p154, %p155
      %p158 = scmp.ne.s32.totalorder %s141, %s157
      %p159 = scmp.eq.s32.totalorder %s23, 0
      %p160 = por %p158, %p159
      %p161 = scmp.le.s32.totalorder 1, %s17
      %p162 = scmp.lt.s32.totalorder %s17, 3
      %p163 = pnand %p161, %p162
      %p164 = pneg %p163
      // Predicated region
      $region9: #{tpu_custom_call.1} parent=5 // pred_check
        _
      $region10: #{tpu_custom_call.1} parent=5 // pred_check_branch
        %166 = sbr.rel (%p163) target = $region12
      $region11: #{tpu_custom_call.1} parent=5 // pred_region
        %s167 = ssub.s32 %s17, 1
        // Predicated region
        $region13: #{tpu_custom_call.1} parent=11 // pred_check
          %p168 = pneg %p64
        $region14: #{tpu_custom_call.1} parent=11 // pred_check_branch
          %170 = sbr.rel (%p168) target = $region16
        $region15: #{tpu_custom_call.1} parent=11 // pred_region
          _
        $region16: #{tpu_custom_call.1} parent=11 // pred_fallthru
          _
        // Predicated region
        $region17: #{tpu_custom_call.1} parent=11 // pred_check
          %p171 = pneg %p85
        $region18: #{tpu_custom_call.1} parent=11 // pred_check_branch
          %173 = sbr.rel (%p171) target = $region20
        $region19: #{tpu_custom_call.1} parent=11 // pred_region
          _
        $region20: #{tpu_custom_call.1} parent=11 // pred_fallthru
          _
        // Predicated region
        $region21: #{tpu_custom_call.1} parent=11 // pred_check
          %p174 = pneg %p106
        $region22: #{tpu_custom_call.1} parent=11 // pred_check_branch
          %176 = sbr.rel (%p174) target = $region24
        $region23: #{tpu_custom_call.1} parent=11 // pred_region
          _
        $region24: #{tpu_custom_call.1} parent=11 // pred_fallthru
          _
        // Predicated region
        $region25: #{tpu_custom_call.1} parent=11 // pred_check
          %p177 = pneg %p127
        $region26: #{tpu_custom_call.1} parent=11 // pred_check_branch
          %179 = sbr.rel (%p177) target = $region28
        $region27: #{tpu_custom_call.1} parent=11 // pred_region
          _
        $region28: #{tpu_custom_call.1} parent=11 // pred_fallthru
          _
      $region12: #{tpu_custom_call.1} parent=5 // pred_fallthru
        _
      %p180 = scmp.lt.s32.totalorder %s17, 2
      // Predicated region
      $region29: #{tpu_custom_call.1} parent=5 // pred_check
        %p181 = pneg %p180
      $region30: #{tpu_custom_call.1} parent=5 // pred_check_branch
        %183 = sbr.rel (%p181) target = $region32
      $region31: #{tpu_custom_call.1} parent=5 // pred_region
        // Predicated region
        $region33: #{tpu_custom_call.1} parent=31 // pred_check
          %p184 = pneg %p37
        $region34: #{tpu_custom_call.1} parent=31 // pred_check_branch
          %186 = sbr.rel (%p184) target = $region36
        $region35: #{tpu_custom_call.1} parent=31 // pred_region
          %s187 = sand.u32 %s27, 1
          %s188 = scalar_lea.sflag [#allocation3], %s187
          %s189 = sand.u32 %s27, 1
          %s190 = smul.addr %s189, 32
          %s191 = scalar_lea.vmem [#allocation2], %s190
          %s193 = ssub.s32 512, 512
          %194 = vsyncadd %s188, %s193
          %s195 = smul.addr %s17, 4
          %s196 = smul.addr %s195, 128
          %s197 = scalar_lea.hbm %s0, %s196
          %s198 = sshll.u32 %s191, 4
          %s199 = int_to_ptr.vmem [resolvable:$true] %s198
          %204 = dma.hbm_to_vmem [thread:$0]  %s197, 512, %s199, %s188, 256, 256, 16
        $region36: #{tpu_custom_call.1} parent=31 // pred_fallthru
          _
      $region32: #{tpu_custom_call.1} parent=5 // pred_fallthru
        _
      %p205 = scmp.le.s32.totalorder 1, %s17
      %p206 = scmp.lt.s32.totalorder %s17, 3
      %p207 = pnand %p205, %p206
      %p208 = pneg %p207
      // Predicated region
      $region37: #{tpu_custom_call.1} parent=5 // pred_check
        _
      $region38: #{tpu_custom_call.1} parent=5 // pred_check_branch
        %210 = sbr.rel (%p207) target = $region40
      $region39: #{tpu_custom_call.1} parent=5 // pred_region
        %s211 = ssub.s32 %s17, 1
        %s212 = sand.u32 %s30, 1
        %s213 = scalar_lea.sflag [#allocation3], %s212
        %s214 = sand.u32 %s30, 1
        %s215 = smul.addr %s214, 32
        %s216 = scalar_lea.vmem [#allocation2], %s215
        // Predicated region
        $region41: #{tpu_custom_call.1} parent=39 // pred_check
          %p217 = pneg %p43
        $region42: #{tpu_custom_call.1} parent=39 // pred_check_branch
          %219 = sbr.rel (%p217) target = $region44
        $region43: #{tpu_custom_call.1} parent=39 // pred_region
          %220 = dma.done %s213, 512
        $region44: #{tpu_custom_call.1} parent=39 // pred_fallthru
          _
        %s221 = sand.u32 %s30, 1
        %s222 = scalar_lea.sflag [#allocation3], %s221
        %s223 = sand.u32 %s30, 1
        %s224 = smul.addr %s223, 32
        %s225 = scalar_lea.vmem [#allocation2], %s224
        %p226 = pneg %p43
        %p227 = pneg %p40
        %p228 = pneg %p64
        %p229 = pneg %p61
        %p230 = pneg %p85
        %p231 = pneg %p82
        %p232 = pneg %p106
        %p233 = pneg %p103
        %p234 = pneg %p127
        %p235 = pneg %p124
        %p236 = pneg %p153
        %p237 = pneg %p150
        %s238 = sand.u32 %s140, 1
        %s239 = scalar_lea.sflag [#allocation4], %s238
        %s240 = sand.u32 %s140, 1
        %s241 = smul.addr %s240, 32
        %s242 = scalar_lea.vmem [#allocation5], %s241
        %v243 = vld [vmem:[%s216] sm:$0xff]
        %v244 = vld [vmem:[%s216 + $0x8] sm:$0xff]
        %v245 = vld [vmem:[%s216 + $0x10] sm:$0xff]
        %v246 = vld [vmem:[%s216 + $0x18] sm:$0xff]
        %v247 = vadd.f32 %v243, %v244
        %248 = vadd.xlane.f32.xlu0 %v247
        %v249 = vpop.xlane.xlu0 %248
        %v250 = vadd.f32 %v245, %v246
        %251 = vadd.xlane.f32.xlu0 %v250
        %v252 = vpop.xlane.xlu0 %251
        %v253 = vmul.f32 %v249, 0.00390625
        %v254 = vmul.f32 %v252, 0.00390625
        %v255 = vld [vmem:[%s1] sm:$0x3]
        %v256 = vld [vmem:[%s2] sm:$0x3]
        %vm257 = vcmask 130048
        %v259 = vsel %vm257, %v255, 0
        %261 = vmatprep.subr.mxu0 0.0
        %262 = vmatpush1.msra.mxu0 %v253
        %263 = vmatprep.subr.mxu0 0.0
        %264 = vmatpush1.msra.mxu0 %v254
        %265 = vmatprep.subr.mxu0 0.0
        %266 = vmatpush1.msra.mxu0 0.0
        %267 = vmatprep.subr.mxu0 0.0
        %268 = vmatpush1.msra.mxu0 0.0
        %269 = vmatprep.subr.mxu0 0.0
        %270 = vmatpush1.msra.mxu0 0.0
        %271 = vmatprep.subr.mxu0 0.0
        %272 = vmatpush1.msra.mxu0 0.0
        %273 = vmatprep.subr.mxu0 0.0
        %274 = vmatpush1.msra.mxu0 0.0
        %275 = vmatprep.subr.mxu0 0.0
        %276 = vmatpush1.msra.mxu0 0.0
        %277 = vmatprep.subr.mxu0 0.0
        %278 = vmatpush1.msra.mxu0 0.0
        %279 = vmatprep.subr.mxu0 0.0
        %280 = vmatpush1.msra.mxu0 0.0
        %281 = vmatprep.subr.mxu0 0.0
        %282 = vmatpush1.msra.mxu0 0.0
        %283 = vmatprep.subr.mxu0 0.0
        %284 = vmatpush1.msra.mxu0 0.0
        %285 = vmatprep.subr.mxu0 0.0
        %286 = vmatpush1.msra.mxu0 0.0
        %287 = vmatprep.subr.mxu0 0.0
        %288 = vmatpush1.msra.mxu0 0.0
        %289 = vmatprep.subr.mxu0 0.0
        %290 = vmatpush1.msra.mxu0 0.0
        %291 = vmatprep.subr.mxu0 0.0
        %292 = vmatpush1.msra.mxu0 0.0
        %293 = vmatprep.subr.mxu0 0.0
        %294 = vmatpush1.msra.mxu0 0.0
        %295 = vmatprep.subr.mxu0 0.0
        %296 = vmatpush1.msra.mxu0 0.0
        %297 = vmatprep.subr.mxu0 0.0
        %298 = vmatpush1.msra.mxu0 0.0
        %299 = vmatprep.subr.mxu0 0.0
        %300 = vmatpush1.msra.mxu0 0.0
        %301 = vmatprep.subr.mxu0 0.0
        %302 = vmatpush1.msra.mxu0 0.0
        %303 = vmatprep.subr.mxu0 0.0
        %304 = vmatpush1.msra.mxu0 0.0
        %305 = vmatprep.subr.mxu0 0.0
        %306 = vmatpush1.msra.mxu0 0.0
        %307 = vmatprep.subr.mxu0 0.0
        %308 = vmatpush1.msra.mxu0 0.0
        %309 = vmatprep.subr.mxu0 0.0
        %310 = vmatpush1.msra.mxu0 0.0
        %311 = vmatprep.subr.mxu0 0.0
        %312 = vmatpush1.msra.mxu0 0.0
        %313 = vmatprep.subr.mxu0 0.0
        %314 = vmatpush1.msra.mxu0 0.0
        %315 = vmatprep.subr.mxu0 0.0
        %316 = vmatpush1.msra.mxu0 0.0
        %317 = vmatprep.subr.mxu0 0.0
        %318 = vmatpush1.msra.mxu0 0.0
        %319 = vmatprep.subr.mxu0 0.0
        %320 = vmatpush1.msra.mxu0 0.0
        %321 = vmatprep.subr.mxu0 0.0
        %322 = vmatpush1.msra.mxu0 0.0
        %323 = vmatprep.subr.mxu0 0.0
        %324 = vmatpush1.msra.mxu0 0.0
        %325 = vmatprep.mubr.f32.mxu0 0.0
        %326 = vmatmul.mubr.f32.gmra.mrb[0].mxu0 %v259
        %v327 = vpop.f32.mrb[0].mxu0
        %v328 = vadd.f32 %v256, %v327
        %v329 = vpop.f32.mrb[0].mxu0
        %330 = vdwg.mxu0
        %v331 = vmax.f32 %v328, 0.0
        %v332 = vld [vmem:[%s3] sm:$0xff]
        %v333 = vld [vmem:[%s3 + $0x8] sm:$0xff]
        %v334 = vld [vmem:[%s4] sm:$0xff]
        %v335 = vld [vmem:[%s4 + $0x8] sm:$0xff]
        %vm336 = vcmask 15360
        %v338 = vsel %vm336, %v332, 0
        %v341 = vsel %vm336, %v333, 0
        %vm343 = vcmask 1041408
        %v345 = vsel %vm343, %v331, 0
        %347 = vmatprep.subr.mxu0 0.0
        %348 = vmatpush1.msra.mxu0 %v345
        %349 = vmatprep.subr.mxu0 0.0
        %350 = vmatpush1.msra.mxu0 0.0
        %351 = vmatprep.subr.mxu0 0.0
        %352 = vmatpush1.msra.mxu0 0.0
        %353 = vmatprep.subr.mxu0 0.0
        %354 = vmatpush1.msra.mxu0 0.0
        %355 = vmatprep.subr.mxu0 0.0
        %356 = vmatpush1.msra.mxu0 0.0
        %357 = vmatprep.subr.mxu0 0.0
        %358 = vmatpush1.msra.mxu0 0.0
        %359 = vmatprep.subr.mxu0 0.0
        %360 = vmatpush1.msra.mxu0 0.0
        %361 = vmatprep.subr.mxu0 0.0
        %362 = vmatpush1.msra.mxu0 0.0
        %363 = vmatprep.subr.mxu0 0.0
        %364 = vmatpush1.msra.mxu0 0.0
        %365 = vmatprep.subr.mxu0 0.0
        %366 = vmatpush1.msra.mxu0 0.0
        %367 = vmatprep.subr.mxu0 0.0
        %368 = vmatpush1.msra.mxu0 0.0
        %369 = vmatprep.subr.mxu0 0.0
        %370 = vmatpush1.msra.mxu0 0.0
        %371 = vmatprep.subr.mxu0 0.0
        %372 = vmatpush1.msra.mxu0 0.0
        %373 = vmatprep.subr.mxu0 0.0
        %374 = vmatpush1.msra.mxu0 0.0
        %375 = vmatprep.subr.mxu0 0.0
        %376 = vmatpush1.msra.mxu0 0.0
        %377 = vmatprep.subr.mxu0 0.0
        %378 = vmatpush1.msra.mxu0 0.0
        %379 = vmatprep.subr.mxu0 0.0
        %380 = vmatpush1.msra.mxu0 0.0
        %381 = vmatprep.subr.mxu0 0.0
        %382 = vmatpush1.msra.mxu0 0.0
        %383 = vmatprep.subr.mxu0 0.0
        %384 = vmatpush1.msra.mxu0 0.0
        %385 = vmatprep.subr.mxu0 0.0
        %386 = vmatpush1.msra.mxu0 0.0
        %387 = vmatprep.subr.mxu0 0.0
        %388 = vmatpush1.msra.mxu0 0.0
        %389 = vmatprep.subr.mxu0 0.0
        %390 = vmatpush1.msra.mxu0 0.0
        %391 = vmatprep.subr.mxu0 0.0
        %392 = vmatpush1.msra.mxu0 0.0
        %393 = vmatprep.subr.mxu0 0.0
        %394 = vmatpush1.msra.mxu0 0.0
        %395 = vmatprep.subr.mxu0 0.0
        %396 = vmatpush1.msra.mxu0 0.0
        %397 = vmatprep.subr.mxu0 0.0
        %398 = vmatpush1.msra.mxu0 0.0
        %399 = vmatprep.subr.mxu0 0.0
        %400 = vmatpush1.msra.mxu0 0.0
        %401 = vmatprep.subr.mxu0 0.0
        %402 = vmatpush1.msra.mxu0 0.0
        %403 = vmatprep.subr.mxu0 0.0
        %404 = vmatpush1.msra.mxu0 0.0
        %405 = vmatprep.subr.mxu0 0.0
        %406 = vmatpush1.msra.mxu0 0.0
        %407 = vmatprep.subr.mxu0 0.0
        %408 = vmatpush1.msra.mxu0 0.0
        %409 = vmatprep.subr.mxu0 0.0
        %410 = vmatpush1.msra.mxu0 0.0
        %411 = vmatprep.mubr.f32.mxu0 0.0
        %412 = vmatmul.mubr.f32.gmra.mrb[0].mxu0 %v338
        %v413 = vpop.f32.mrb[0].mxu0
        %v414 = vadd.f32 %v334, %v413
        %v415 = vpop.f32.mrb[0].mxu0
        %416 = vmatprep.mubr.f32.mxu0 0.0
        %417 = vmatmul.mubr.f32.gmra.mrb[0].mxu0 %v341
        %v418 = vpop.f32.mrb[0].mxu0
        %v419 = vadd.f32 %v335, %v418
        %v420 = vpop.f32.mrb[0].mxu0
        %421 = vdwg.mxu0
        %423 = vset.pattern.permute.xlu0 0
        %424 = vperm.xlu0 %423, %v414
        %v425 = vpop.permute.xlu0 %424
        %428 = vset.pattern.permute.xlu0 0
        %429 = vperm.xlu0 %428, %v419
        %v430 = vpop.permute.xlu0 %429
        %v432 = vmul.f32 %v243, %v425
        %v433 = vmul.f32 %v244, %v425
        %v434 = vmul.f32 %v245, %v430
        %v435 = vmul.f32 %v246, %v430
        %v436 = vadd.f32 %v432, %v434
        %v437 = vrot.slane %v436, 4
        %v438 = vadd.f32 %v436, %v437
        %v439 = vrot.slane %v438, 2
        %v440 = vadd.f32 %v438, %v439
        %v441 = vrot.slane %v440, 1
        %v442 = vadd.f32 %v440, %v441
        %v443 = vadd.f32 %v433, %v435
        %v444 = vrot.slane %v443, 4
        %v445 = vadd.f32 %v443, %v444
        %v446 = vrot.slane %v445, 2
        %v447 = vadd.f32 %v445, %v446
        %v448 = vrot.slane %v447, 1
        %v449 = vadd.f32 %v447, %v448
        %v450 = vxor.u32 %v442, 2147483648
        %v451 = vxor.u32 %v449, 2147483648
        %v452 = vmul.f32 %v450, 1.442695
        %v453 = vpow.pop %v452
        %v454 = vmul.f32 %v451, 1.442695
        %v455 = vpow.pop %v454
        %v456 = vadd.f32 %v453, 1.0
        %v457 = vadd.f32 %v455, 1.0
        %v458 = vrcp.pop %v456
        %v459 = vmul.f32 1.0, %v458
        %v460 = vrcp.pop %v457
        %v461 = vmul.f32 1.0, %v460
        %v462 = vmul.f32 %v243, %v459
        %v463 = vmul.f32 %v244, %v461
        %v464 = vmul.f32 %v245, %v459
        %v465 = vmul.f32 %v246, %v461
        %466 = vst [vmem:[%s242] sm:$0xff] %v462
        %467 = vst [vmem:[%s242 + $0x8] sm:$0xff] %v463
        %468 = vst [vmem:[%s242 + $0x10] sm:$0xff] %v464
        %469 = vst [vmem:[%s242 + $0x18] sm:$0xff] %v465
        %s470 = sand.u32 %s140, 1
        %s471 = scalar_lea.sflag [#allocation4], %s470
        %s472 = sand.u32 %s140, 1
        %s473 = smul.addr %s472, 32
        %s474 = scalar_lea.vmem [#allocation5], %s473
        // Predicated region
        $region45: #{tpu_custom_call.1} parent=39 // pred_check
          %p475 = pneg %p150
        $region46: #{tpu_custom_call.1} parent=39 // pred_check_branch
          %477 = sbr.rel (%p475) target = $region48
        $region47: #{tpu_custom_call.1} parent=39 // pred_region
          %s479 = ssub.s32 512, 512
          %480 = vsyncadd %s471, %s479
          %s481 = smul.addr %s22, 4
          %s482 = smul.addr %s481, 128
          %s483 = scalar_lea.hbm %s5, %s482
          %s484 = sshll.u32 %s474, 4
          %s485 = int_to_ptr.vmem [resolvable:$true] %s484
          %490 = dma.vmem_to_hbm [thread:$0]  %s485, 512, %s483, %s471, 256, 256, 16
        $region48: #{tpu_custom_call.1} parent=39 // pred_fallthru
          _
      $region40: #{tpu_custom_call.1} parent=5 // pred_fallthru
        _
      %p491 = scmp.le.s32.totalorder 2, %s17
      // Predicated region
      $region49: #{tpu_custom_call.1} parent=5 // pred_check
        %p492 = pneg %p491
      $region50: #{tpu_custom_call.1} parent=5 // pred_check_branch
        %494 = sbr.rel (%p492) target = $region52
      $region51: #{tpu_custom_call.1} parent=5 // pred_region
        %s495 = ssub.s32 %s17, 2
        // Predicated region
        $region53: #{tpu_custom_call.1} parent=51 // pred_check
          %p496 = pneg %p156
        $region54: #{tpu_custom_call.1} parent=51 // pred_check_branch
          %498 = sbr.rel (%p496) target = $region56
        $region55: #{tpu_custom_call.1} parent=51 // pred_region
          %s499 = sand.u32 %s141, 1
          %s500 = scalar_lea.sflag [#allocation4], %s499
          %s501 = sand.u32 %s141, 1
          %s502 = smul.addr %s501, 32
          %s503 = scalar_lea.vmem [#allocation5], %s502
          %504 = dma.done %s500, 512
        $region56: #{tpu_custom_call.1} parent=51 // pred_fallthru
          _
      $region52: #{tpu_custom_call.1} parent=5 // pred_fallthru
        _
    $region6: #{tpu_custom_call.1} parent=1 // loop_footer
      %s21 = sadd.s32 1, %s17
    $region7: #{tpu_custom_call.1} parent=1 // loop_footer_branch
      %16 = sbr.rel target = $region3
    $region8: #{tpu_custom_call.1} parent=1 // loop_exit
      _
    %505 = vsyncpa [#allocation3], 1
    %s506 = scalar_lea.sflag [#allocation3], 1
    %507 = vsyncpa %s506, 1
    %508 = vsyncpa [#allocation4], 1
    %s509 = scalar_lea.sflag [#allocation4], 1
    %510 = vsyncpa %s509, 1

</llo_original>
